<compile_context>
chip_gen: v7x
topology: tpu7x:2x2x1
jax: 0.10.0
libtpu: 0.0.40
codegen_flags: <defaults>
</compile_context>

<pallas_src>
import jax
import jax.numpy as jnp
from jax.experimental import pallas as pl
from jax.experimental.pallas import tpu as pltpu


def _round_up(x, m):
    return ((x + m - 1) // m) * m


def _bilinear_kernel(x1_ref, x2_ref, w_ref, b_ref, o_ref):
    # x1_ref: (TB, N1)  MXU dtype (bf16)
    # x2_ref: (TB, N2)  f32
    # w_ref : (N1, N2)  MXU dtype (bf16), block index constant -> VMEM resident
    # b_ref : (1, 1)    f32 scalar in SMEM
    # o_ref : (TB, 1)
    t = jnp.dot(x1_ref[...], w_ref[...],
                preferred_element_type=jnp.float32)                    # MXU, (TB, N2)
    red = jnp.sum(t * x2_ref[...], axis=-1, keepdims=True)             # f32 VPU mul + lane reduce
    o_ref[...] = (red + b_ref[0, 0]).astype(o_ref.dtype)


def bilinear_classifier(x1, x2, w, b, *, block_b=512, mxu_dtype=jnp.bfloat16):
    """out[b, 0] = sum_{i,j} x1[b,i] * w[i,j] * x2[b,j] + bias (nn.Bilinear, out_features=1)."""
    B, N1 = x1.shape
    B2, N2 = x2.shape
    assert B == B2
    assert w.shape == (N1, N2)
    out_dtype = x1.dtype

    # Batch tile: multiple of 8 sublanes, capped at block_b.
    tb = max(8, min(block_b, _round_up(B, 8)))
    tb = _round_up(tb, 8)
    b_pad = _round_up(B, tb)

    # MXU operands in bf16 (f32 accumulation inside the kernel); elementwise path in f32.
    x1p = x1.astype(mxu_dtype)
    x2p = x2.astype(jnp.float32)
    if b_pad != B:
        x1p = jnp.pad(x1p, ((0, b_pad - B), (0, 0)))
        x2p = jnp.pad(x2p, ((0, b_pad - B), (0, 0)))
    wp = w.astype(mxu_dtype)
    b2d = jnp.asarray(b, jnp.float32).reshape(1, 1)

    grid = (b_pad // tb,)

    # VMEM budget (double-buffered x1/x2/out tiles + resident W + headroom),
    # sized to stay comfortably under v7x's 64 MiB physical VMEM.
    mxu_bytes = jnp.dtype(mxu_dtype).itemsize
    est = (2 * tb * N1 * mxu_bytes
           + 2 * tb * N2 * 4
           + 2 * N1 * N2 * mxu_bytes
           + 2 * tb * jnp.dtype(out_dtype).itemsize
           + (1 << 20))
    vmem_limit = int(min(max(est, 16 * 1024 * 1024), 48 * 1024 * 1024))

    out = pl.pallas_call(
        _bilinear_kernel,
        out_shape=jax.ShapeDtypeStruct((b_pad, 1), out_dtype),
        grid_spec=pltpu.PrefetchScalarGridSpec(
            num_scalar_prefetch=0,
            grid=grid,
            in_specs=[
                pl.BlockSpec((tb, N1), lambda i: (i, 0)),            # x1 tile (pipelined)
                pl.BlockSpec((tb, N2), lambda i: (i, 0)),            # x2 tile (pipelined)
                pl.BlockSpec((N1, N2), lambda i: (0, 0)),            # W: constant index -> resident
                pl.BlockSpec(memory_space=pltpu.MemorySpace.SMEM),   # bias scalar in SMEM
            ],
            out_specs=pl.BlockSpec((tb, 1), lambda i: (i, 0)),
        ),
        compiler_params=pltpu.CompilerParams(
            dimension_semantics=("parallel",),   # megacore-shardable batch axis (v7x)
            vmem_limit_bytes=vmem_limit,
        ),
    )(x1p, x2p, wp, b2d)

    return out[:B]


def reference_bilinear(x1, x2, w, b, mxu_dtype=jnp.float32):
    # Pure-JAX reference matching torch.nn.Bilinear(out_features=1); optionally
    # mirrors the kernel's bf16 MXU-input cast for tight comparison.
    x1c = x1.astype(mxu_dtype).astype(jnp.float32)
    wc = w.astype(mxu_dtype).astype(jnp.float32)
    x2c = x2.astype(jnp.float32)
    return jnp.einsum("bi,ij,bj->b", x1c, wc, x2c)[:, None] + b[None, :]


if __name__ == "__main__":
    key = jax.random.PRNGKey(0)
    k_x1, k_x2, k_w, k_b = jax.random.split(key, 4)

    B = 8            # batch
    NUM_INPUTS1 = 32
    NUM_INPUTS2 = 32

    x1 = jax.random.normal(k_x1, (B, NUM_INPUTS1), dtype=jnp.float32)
    x2 = jax.random.normal(k_x2, (B, NUM_INPUTS2), dtype=jnp.float32)

    # Deterministic parameter init, mirroring nn.Bilinear's U(-1/sqrt(in1), 1/sqrt(in1)).
    bound = 1.0 / (NUM_INPUTS1 ** 0.5)
    w = jax.random.uniform(k_w, (NUM_INPUTS1, NUM_INPUTS2),
                           minval=-bound, maxval=bound, dtype=jnp.float32)
    b = jax.random.uniform(k_b, (1,), minval=-bound, maxval=bound, dtype=jnp.float32)

    out = bilinear_classifier(x1, x2, w, b)
    out = jax.block_until_ready(out)
    assert out.shape == (B, 1)

    # Tight check vs. a reference using the same bf16 MXU-input cast.
    ref_bf16 = reference_bilinear(x1, x2, w, b, mxu_dtype=jnp.bfloat16)
    assert jnp.allclose(out, ref_bf16, atol=1e-3, rtol=1e-3)

    # Loose sanity check vs. the exact f32 nn.Bilinear semantics.
    ref_f32 = reference_bilinear(x1, x2, w, b, mxu_dtype=jnp.float32)
    assert jnp.allclose(out, ref_f32, atol=1e-1, rtol=5e-2)

    print("KERNEL_OK")
</pallas_src>

<mosaic_0001>
module attributes {stable_mosaic.version = 11 : i64} {
  func.func @_bilinear_kernel(%arg0: i32, %arg1: memref<8x32xbf16, #tpu.memory_space<vmem>>, %arg2: memref<8x32xf32, #tpu.memory_space<vmem>>, %arg3: memref<32x32xbf16, #tpu.memory_space<vmem>>, %arg4: memref<1x1xf32, #tpu.memory_space<smem>>, %arg5: memref<8x1xf32, #tpu.memory_space<vmem>>) attributes {dimension_semantics = [#tpu.dimension_semantics<parallel>], iteration_bounds = array<i64: 1>, scalar_prefetch = 0 : i64, scratch_operands = 0 : i64, tpu.core_type = #tpu.core_type<tc>, window_params = [{transform_indices = @transform_0, window_bounds = array<i64: 8, 32>}, {transform_indices = @transform_1, window_bounds = array<i64: 8, 32>}, {pipeline_mode = #tpu.pipeline_mode<synchronous>, transform_indices = @transform_2, window_bounds = array<i64: 32, 32>}, {transform_indices = @transform_3, window_bounds = array<i64: 1, 1>}, {transform_indices = @transform_4, window_bounds = array<i64: 8, 1>}]} {
    %c0 = arith.constant 0 : index
    %c0_0 = arith.constant 0 : index
    %0 = vector.load %arg1[%c0, %c0_0] : memref<8x32xbf16, #tpu.memory_space<vmem>>, vector<8x32xbf16>
    %c0_1 = arith.constant 0 : index
    %c0_2 = arith.constant 0 : index
    %1 = vector.load %arg3[%c0_1, %c0_2] : memref<32x32xbf16, #tpu.memory_space<vmem>>, vector<32x32xbf16>
    %cst = arith.constant dense<0.000000e+00> : vector<8x32xf32>
    %2 = tpu.matmul %0, %1, %cst {dimension_numbers = #tpu.dot_dimension_numbers<[1], [0], [0], [1], [0, 0, 1, 1], [], []>} : vector<8x32xbf16>, vector<32x32xbf16>, vector<8x32xf32> -> vector<8x32xf32>
    %c0_3 = arith.constant 0 : index
    %c0_4 = arith.constant 0 : index
    %3 = vector.load %arg2[%c0_3, %c0_4] : memref<8x32xf32, #tpu.memory_space<vmem>>, vector<8x32xf32>
    %4 = arith.mulf %2, %3 : vector<8x32xf32>
    %cst_5 = arith.constant dense<0.000000e+00> : vector<8xf32>
    %5 = vector.multi_reduction <add>, %4, %cst_5 [1] : vector<8x32xf32> to vector<8xf32>
    %6 = vector.shape_cast %5 : vector<8xf32> to vector<8x1xf32>
    %c0_6 = arith.constant 0 : index
    %c0_7 = arith.constant 0 : index
    %7 = memref.load %arg4[%c0_6, %c0_7] : memref<1x1xf32, #tpu.memory_space<smem>>
    %8 = vector.broadcast %7 : f32 to vector<8x1xf32>
    %9 = arith.addf %6, %8 : vector<8x1xf32>
    %c0_8 = arith.constant 0 : index
    %c0_9 = arith.constant 0 : index
    %10 = vector.load %arg5[%c0_8, %c0_9] : memref<8x1xf32, #tpu.memory_space<vmem>>, vector<8x1xf32>
    tpu.vector_store %arg5[%c0_8, %c0_9], %9 {strides = array<i32>} : memref<8x1xf32, #tpu.memory_space<vmem>>, vector<8x1xf32>,
    return
  }
  func.func @transform_0(%arg0: i32) -> (i32, i32) {
    %c0_i32 = arith.constant 0 : i32
    %c0_i32_0 = arith.constant 0 : i32
    return %arg0, %c0_i32 : i32, i32
  }
  func.func @transform_1(%arg0: i32) -> (i32, i32) {
    %c0_i32 = arith.constant 0 : i32
    %c0_i32_0 = arith.constant 0 : i32
    return %arg0, %c0_i32 : i32, i32
  }
  func.func @transform_2(%arg0: i32) -> (i32, i32) {
    %c0_i32 = arith.constant 0 : i32
    %c0_i32_0 = arith.constant 0 : i32
    %c0_i32_1 = arith.constant 0 : i32
    return %c0_i32, %c0_i32_0 : i32, i32
  }
  func.func @transform_3(%arg0: i32) -> (i32, i32) {
    %c0_i32 = arith.constant 0 : i32
    %c0_i32_0 = arith.constant 0 : i32
    %c0_i32_1 = arith.constant 0 : i32
    return %c0_i32, %c0_i32_0 : i32, i32
  }
  func.func @transform_4(%arg0: i32) -> (i32, i32) {
    %c0_i32 = arith.constant 0 : i32
    %c0_i32_0 = arith.constant 0 : i32
    return %arg0, %c0_i32 : i32, i32
  }
}

</mosaic_0001>

<llo_original>
// kernel: tpu_custom_call.1
$region0: #{tpu_custom_call.1}
  #allocation0 [shape = 'u32[]', space=smem, size = 0x4, offset = 0x4, fixed_abs, tag = 'smem constant byte address 0x4 - core index']
  #allocation1 [shape = 'u32[144,128]{1,0:T(1,128)}', space=vmem, size = 0x12000, scoped, tag = 'internal scratch']
  #allocation2 [shape = 'f32[1,1]{1,0:T(1,128)S(6)}', space=smem, size = 0x200, scoped, tag = 'scoped memory for tpu_custom_call.1']
  %s0 = inlined_call_operand.hbm [shape: bf16[8,32], index: 0, kind: input, shape index: {}]
  %s1 = inlined_call_operand.hbm [shape: f32[8,32], index: 1, kind: input, shape index: {}]
  %s2 = inlined_call_operand.hbm [shape: bf16[32,32], index: 2, kind: input, shape index: {}]
  %s3 = inlined_call_operand.<no memory space> [shape: f32[1,1], index: 3, kind: input, shape index: {}]
  %s4 = inlined_call_operand.vmem [shape: f32[8,1], index: 4, kind: output, shape index: {}]
  %s5 = sld [smem:[#allocation0]]
  $region38: #{tpu_custom_call.1} parent=0
    _
  %s7 = ssub.s32 1, %s5
  %s8 = scalar_select 0, %s7, %s5
  %9 = sst [smem:[#allocation2]] %s3
  $region1: #{tpu_custom_call.1} parent=0
    #allocation3 [shape = 'u8[2048]{0}', space=vmem, size = 0x800, scoped, tag = 'input window, operand 0, single buffered']
    #allocation4 [shape = 's32[1]{0}', space=sflag, size = 0x4, scoped, tag = 'scoped memory for tpu_custom_call.1']
    #allocation5 [shape = 'u8[4096]{0}', space=vmem, size = 0x1000, scoped, tag = 'input window, operand 1, single buffered']
    #allocation6 [shape = 's32[1]{0}', space=sflag, size = 0x4, scoped, tag = 'scoped memory for tpu_custom_call.1']
    #allocation7 [shape = 'u8[8192]{0}', space=vmem, size = 0x2000, scoped, tag = 'input window, operand 2, single buffered']
    %10 = vsyncpa [#allocation4], 0
    %11 = vsyncpa [#allocation6], 0
    // Predicated region
    $region2: #{tpu_custom_call.1} parent=1 // pred_check
      _
    $region3: #{tpu_custom_call.1} parent=1 // pred_check_branch
      %13 = sbr.rel (0) target = $region5
    $region4: #{tpu_custom_call.1} parent=1 // pred_region
      %s15 = ssub.s32 64, 64
      %16 = vsyncadd [#allocation4], %s15
      %s18 = sshll.u32 [#allocation3], 4
      %s19 = int_to_ptr.vmem [resolvable:$true] %s18
      %21 = dma.hbm_to_vmem [thread:$0]  %s0, 64, %s19, [#allocation4]
    $region5: #{tpu_custom_call.1} parent=1 // pred_fallthru
      _
    // Predicated region
    $region6: #{tpu_custom_call.1} parent=1 // pred_check
      _
    $region7: #{tpu_custom_call.1} parent=1 // pred_check_branch
      %23 = sbr.rel (0) target = $region9
    $region8: #{tpu_custom_call.1} parent=1 // pred_region
      %s25 = ssub.s32 128, 128
      %26 = vsyncadd [#allocation6], %s25
      %s28 = sshll.u32 [#allocation5], 4
      %s29 = int_to_ptr.vmem [resolvable:$true] %s28
      %31 = dma.hbm_to_vmem [thread:$0]  %s1, 128, %s29, [#allocation6]
    $region9: #{tpu_custom_call.1} parent=1 // pred_fallthru
      _
    // Predicated region
    $region10: #{tpu_custom_call.1} parent=1 // pred_check
      _
    $region11: #{tpu_custom_call.1} parent=1 // pred_check_branch
      %33 = sbr.rel (0) target = $region13
    $region12: #{tpu_custom_call.1} parent=1 // pred_region
      %s35 = ssub.s32 256, 256
      %36 = vsyncadd [#allocation6], %s35
      %s37 = sshll.u32 [#allocation7], 4
      %s38 = int_to_ptr.vmem [resolvable:$true] %s37
      %43 = dma.hbm_to_vmem [thread:$0]  %s2, 256, %s38, [#allocation6], 64, 64, 4
    $region13: #{tpu_custom_call.1} parent=1 // pred_fallthru
      _
    // Predicated region
    $region14: #{tpu_custom_call.1} parent=1 // pred_check
      _
    $region15: #{tpu_custom_call.1} parent=1 // pred_check_branch
      %45 = sbr.rel (0) target = $region17
    $region16: #{tpu_custom_call.1} parent=1 // pred_region
      _
    $region17: #{tpu_custom_call.1} parent=1 // pred_fallthru
      _
    // Predicated region
    $region18: #{tpu_custom_call.1} parent=1 // pred_check
      _
    $region19: #{tpu_custom_call.1} parent=1 // pred_check_branch
      %47 = sbr.rel (0) target = $region21
    $region20: #{tpu_custom_call.1} parent=1 // pred_region
      %48 = dma.done [#allocation4], 64
    $region21: #{tpu_custom_call.1} parent=1 // pred_fallthru
      _
    // Predicated region
    $region22: #{tpu_custom_call.1} parent=1 // pred_check
      _
    $region23: #{tpu_custom_call.1} parent=1 // pred_check_branch
      %50 = sbr.rel (0) target = $region25
    $region24: #{tpu_custom_call.1} parent=1 // pred_region
      %51 = dma.done [#allocation6], 128
    $region25: #{tpu_custom_call.1} parent=1 // pred_fallthru
      _
    // Predicated region
    $region26: #{tpu_custom_call.1} parent=1 // pred_check
      _
    $region27: #{tpu_custom_call.1} parent=1 // pred_check_branch
      %53 = sbr.rel (0) target = $region29
    $region28: #{tpu_custom_call.1} parent=1 // pred_region
      %54 = dma.done [#allocation6], 256
    $region29: #{tpu_custom_call.1} parent=1 // pred_fallthru
      _
    %v56 = vld [vmem:[#allocation3] sm:$0xf]
    %v57 = vld [vmem:[#allocation7] sm:$0xf]
    %v58 = vld [vmem:[#allocation7 + $0x4] sm:$0xf]
    %v59 = vld [vmem:[#allocation7 + $0x8] sm:$0xf]
    %v60 = vld [vmem:[#allocation7 + $0xc] sm:$0xf]
    %v65 = vunpack.c.l.b16 %v57
    %v66 = vunpack.c.l.b16 %v58
    %v67 = vunpack.c.l.b16 %v59
    %v68 = vunpack.c.l.b16 %v60
    %v69 = vpack.c.b16 %v66, %v65
    %v70 = vpack.c.b16 %v68, %v67
    %vm73 = vcmask 261120
    %v75 = vsel %vm73, %v56, 0
    %77 = vmatprep.subr.bf16.mxu0 0
    %78 = vmatpush1.bf16.msra.mxu0 %v69
    %79 = vmatprep.subr.bf16.mxu0 0
    %80 = vmatpush1.bf16.msra.mxu0 %v70
    %81 = vmatprep.subr.bf16.mxu0 0
    %82 = vmatpush1.bf16.msra.mxu0 0
    %83 = vmatprep.subr.bf16.mxu0 0
    %84 = vmatpush1.bf16.msra.mxu0 0
    %85 = vmatprep.subr.bf16.mxu0 0
    %86 = vmatpush1.bf16.msra.mxu0 0
    %87 = vmatprep.subr.bf16.mxu0 0
    %88 = vmatpush1.bf16.msra.mxu0 0
    %89 = vmatprep.subr.bf16.mxu0 0
    %90 = vmatpush1.bf16.msra.mxu0 0
    %91 = vmatprep.subr.bf16.mxu0 0
    %92 = vmatpush1.bf16.msra.mxu0 0
    %93 = vmatprep.subr.bf16.mxu0 0
    %94 = vmatpush1.bf16.msra.mxu0 0
    %95 = vmatprep.subr.bf16.mxu0 0
    %96 = vmatpush1.bf16.msra.mxu0 0
    %97 = vmatprep.subr.bf16.mxu0 0
    %98 = vmatpush1.bf16.msra.mxu0 0
    %99 = vmatprep.subr.bf16.mxu0 0
    %100 = vmatpush1.bf16.msra.mxu0 0
    %101 = vmatprep.subr.bf16.mxu0 0
    %102 = vmatpush1.bf16.msra.mxu0 0
    %103 = vmatprep.subr.bf16.mxu0 0
    %104 = vmatpush1.bf16.msra.mxu0 0
    %105 = vmatprep.subr.bf16.mxu0 0
    %106 = vmatpush1.bf16.msra.mxu0 0
    %107 = vmatprep.subr.bf16.mxu0 0
    %108 = vmatpush1.bf16.msra.mxu0 0
    %109 = vmatprep.mubr.bf16.mxu0 0
    %110 = vmatmul.mubr.bf16.gmra.mrb[0].mxu0 %v75
    %v111 = vpop.f32.mrb[0].mxu0
    %v112 = vadd.f32 0.0, %v111
    %v113 = vpop.f32.mrb[0].mxu0
    %v114 = vpop.f32.mrb[0].mxu0
    %v115 = vpop.f32.mrb[0].mxu0
    %116 = vdwg.mxu0
    %v117 = vld [vmem:[#allocation5] sm:$0xff]
    %v118 = vmul.f32 %v112, %v117
    %v119 = vsel %vm73, %v118, 0.0
    %120 = vadd.xlane.f32.xlu0 %v119
    %v121 = vpop.xlane.xlu0 %120
    %s122 = sld [smem:[#allocation2]]
    %v123 = vstv %s122
    %v124 = vadd.f32 %v121, %v123
    %vm125 = vcmask 7168
    %126 = vst.msk [vmem:[%s4] sm:$0xff] %vm125, %v124
    // Predicated region
    $region30: #{tpu_custom_call.1} parent=1 // pred_check
      _
    $region31: #{tpu_custom_call.1} parent=1 // pred_check_branch
      %128 = sbr.rel (0) target = $region33
    $region32: #{tpu_custom_call.1} parent=1 // pred_region
      _
    $region33: #{tpu_custom_call.1} parent=1 // pred_fallthru
      _
    // Predicated region
    $region34: #{tpu_custom_call.1} parent=1 // pred_check
      _
    $region35: #{tpu_custom_call.1} parent=1 // pred_check_branch
      %130 = sbr.rel (0) target = $region37
    $region36: #{tpu_custom_call.1} parent=1 // pred_region
      _
    $region37: #{tpu_custom_call.1} parent=1 // pred_fallthru
      _
    %131 = vsyncpa [#allocation4], 1
    %132 = vsyncpa [#allocation6], 1

</llo_original>
